<compile_context>
chip_gen: v6e
topology: v6e:2x2x1
jax: 0.10.0
libtpu: 0.0.40
codegen_flags: <defaults>
</compile_context>

<pallas_src>
import functools

import jax
import jax.numpy as jnp
import numpy as np
from jax.experimental import pallas as pl
from jax.experimental.pallas import tpu as pltpu

NEG_MASK = -1e30  # finite "minus infinity" for causal masking (avoids NaN corner cases)


def qkv_rope_kernel(x_ref, w_ref, b_ref, cos_ref, sin_ref, q_ref, k_ref, v_ref,
                    *, head_size, scale):
    """Per (batch, seq-tile, head): qkv = x @ W_h + b_h, RoPE on q/k, write (tl, hs) blocks."""
    hs = head_size
    half = hs // 2

    x = x_ref[0]                                   # (tl, D)   bf16
    w = w_ref[0]                                   # (D, 3hs)  bf16
    qkv = jnp.dot(x, w, preferred_element_type=jnp.float32) + b_ref[0]   # (tl, 3hs) f32

    q = qkv[:, 0 * hs:1 * hs]
    k = qkv[:, 1 * hs:2 * hs]
    v = qkv[:, 2 * hs:3 * hs]

    c = cos_ref[...]                               # (tl, hs//2) f32, half-split tables
    s = sin_ref[...]

    def rope(t):
        t1 = t[:, :half]
        t2 = t[:, half:]
        return jnp.concatenate([t1 * c - t2 * s, t2 * c + t1 * s], axis=-1)

    q_ref[0, 0] = (rope(q) * scale).astype(q_ref.dtype)   # scale folded into Q
    k_ref[0, 0] = rope(k).astype(k_ref.dtype)
    v_ref[0, 0] = v.astype(v_ref.dtype)


def flash_outproj_kernel(q_ref, k_ref, v_ref, wout_ref, bout_ref, o_ref,
                         m_sc, l_sc, acc_sc, out_sc, *, q_tile, kv_tile):
    """Flash attention (online softmax) fused with the output projection."""
    qi = pl.program_id(1)
    h = pl.program_id(2)
    kj = pl.program_id(3)
    n_h = pl.num_programs(2)
    n_kv = pl.num_programs(3)

    @pl.when(kj == 0)
    def _():  # fresh online-softmax state for every (batch, q-tile, head)
        m_sc[...] = jnp.full(m_sc.shape, -jnp.inf, jnp.float32)
        l_sc[...] = jnp.zeros(l_sc.shape, jnp.float32)
        acc_sc[...] = jnp.zeros(acc_sc.shape, jnp.float32)

    @pl.when((h == 0) & (kj == 0))
    def _():  # fresh out-proj accumulator for every (batch, q-tile); bias folded in here
        out_sc[...] = jnp.zeros(out_sc.shape, jnp.float32) + bout_ref[...]

    # Causal tile skip: only compute if some kv position <= some q position in this tile pair.
    @pl.when(kj * kv_tile <= qi * q_tile + (q_tile - 1))
    def _():
        q = q_ref[0, 0]                            # (tq, hs) bf16, pre-scaled
        k = k_ref[0, 0]                            # (tk, hs) bf16
        s = jax.lax.dot_general(q, k, (((1,), (1,)), ((), ())),
                                preferred_element_type=jnp.float32)   # (tq, tk)

        row = qi * q_tile + jax.lax.broadcasted_iota(jnp.int32, s.shape, 0)
        col = kj * kv_tile + jax.lax.broadcasted_iota(jnp.int32, s.shape, 1)
        s = jnp.where(row >= col, s, NEG_MASK)

        m_prev = m_sc[...]
        m_new = jnp.maximum(m_prev, jnp.max(s, axis=-1, keepdims=True))
        alpha = jnp.exp(m_prev - m_new)
        p = jnp.exp(s - m_new)
        l_sc[...] = alpha * l_sc[...] + jnp.sum(p, axis=-1, keepdims=True)
        acc_sc[...] = alpha * acc_sc[...] + jnp.dot(
            p.astype(jnp.bfloat16), v_ref[0, 0], preferred_element_type=jnp.float32)
        m_sc[...] = m_new

    @pl.when(kj == n_kv - 1)
    def _():  # finish this head and fold it straight into the output projection
        head_out = acc_sc[...] * pl.reciprocal(l_sc[...], approx=True)   # (tq, hs) f32
        out_sc[...] += jnp.dot(head_out.astype(jnp.bfloat16), wout_ref[0],
                               preferred_element_type=jnp.float32)

    @pl.when((kj == n_kv - 1) & (h == n_h - 1))
    def _():
        o_ref[0] = out_sc[...].astype(o_ref.dtype)


def mha_with_rope(x, wqkv, bqkv, wout, bout, n_heads, *, seq_tile=None):
    B, L, D = x.shape
    H = n_heads
    hs = D // H
    half = hs // 2
    assert H * hs == D and hs % 2 == 0
    tile = seq_tile or min(L, 128)
    assert L % tile == 0
    n_t = L // tile
    scale = 1.0 / float(hs) ** 0.5

    # ---- host-side parameter prep (done once; pure layout work) ----------------------
    # interleaved -> half-split feature permutation, applied to Q and K columns only.
    perm = jnp.concatenate([jnp.arange(0, hs, 2), jnp.arange(1, hs, 2)])

    def per_head_w(cols, permute):
        w = cols.reshape(D, H, hs).transpose(1, 0, 2)            # (H, D, hs)
        return w[:, :, perm] if permute else w

    def per_head_b(cols, permute):
        b = cols.reshape(H, hs)
        return b[:, perm] if permute else b

    w_h = jnp.concatenate([per_head_w(wqkv[:, 0 * D:1 * D], True),
                           per_head_w(wqkv[:, 1 * D:2 * D], True),
                           per_head_w(wqkv[:, 2 * D:3 * D], False)],
                          axis=-1).astype(jnp.bfloat16)           # (H, D, 3*hs)
    b_h = jnp.concatenate([per_head_b(bqkv[0 * D:1 * D], True),
                           per_head_b(bqkv[1 * D:2 * D], True),
                           per_head_b(bqkv[2 * D:3 * D], False)],
                          axis=-1).reshape(H, 1, 3 * hs).astype(jnp.float32)

    # half-split RoPE tables (theta=10000, lucidrains RotaryEmbedding default)
    inv = 1.0 / (10000.0 ** (jnp.arange(0, hs, 2, dtype=jnp.float32) / hs))   # (hs/2,)
    pos = jnp.arange(L, dtype=jnp.float32)
    freqs = pos[:, None] * inv[None, :]                            # (L, hs/2)
    cos, sin = jnp.cos(freqs), jnp.sin(freqs)

    wout_h = wout.reshape(H, hs, D).astype(jnp.bfloat16)           # (H, hs, D)
    bout2 = bout.reshape(1, D).astype(jnp.float32)
    x_bf = x.astype(jnp.bfloat16)

    # ---- kernel 1: QKV projection + RoPE -> q, k, v in (B, H, L, hs) bf16 -------------
    qkv_shape = jax.ShapeDtypeStruct((B, H, L, hs), jnp.bfloat16)
    head_block = pl.BlockSpec((1, 1, tile, hs), lambda b, l, h: (b, h, l, 0))
    q, k, v = pl.pallas_call(
        functools.partial(qkv_rope_kernel, head_size=hs, scale=scale),
        out_shape=(qkv_shape, qkv_shape, qkv_shape),
        grid=(B, n_t, H),
        in_specs=[
            pl.BlockSpec((1, tile, D), lambda b, l, h: (b, l, 0)),       # x (resident over h)
            pl.BlockSpec((1, D, 3 * hs), lambda b, l, h: (h, 0, 0)),     # per-head Wqkv (bf16)
            pl.BlockSpec((1, 1, 3 * hs), lambda b, l, h: (h, 0, 0)),     # per-head bias
            pl.BlockSpec((tile, half), lambda b, l, h: (l, 0)),          # cos
            pl.BlockSpec((tile, half), lambda b, l, h: (l, 0)),          # sin
        ],
        out_specs=(head_block, head_block, head_block),
        compiler_params=pltpu.CompilerParams(
            dimension_semantics=("parallel", "parallel", "parallel"),
            vmem_limit_bytes=48 * 1024 * 1024),
    )(x_bf, w_h, b_h, cos, sin)

    # ---- kernel 2: flash attention + fused output projection --------------------------
    out = pl.pallas_call(
        functools.partial(flash_outproj_kernel, q_tile=tile, kv_tile=tile),
        out_shape=jax.ShapeDtypeStruct((B, L, D), x.dtype),
        grid=(B, n_t, H, n_t),
        in_specs=[
            pl.BlockSpec((1, 1, tile, hs), lambda b, qi, h, kj: (b, h, qi, 0)),  # q
            pl.BlockSpec((1, 1, tile, hs), lambda b, qi, h, kj: (b, h, kj, 0)),  # k
            pl.BlockSpec((1, 1, tile, hs), lambda b, qi, h, kj: (b, h, kj, 0)),  # v
            pl.BlockSpec((1, hs, D), lambda b, qi, h, kj: (h, 0, 0)),            # Wout[h]
            pl.BlockSpec((1, D), lambda b, qi, h, kj: (0, 0)),                   # bout
        ],
        out_specs=pl.BlockSpec((1, tile, D), lambda b, qi, h, kj: (b, qi, 0)),
        scratch_shapes=[
            pltpu.VMEM((tile, 1), jnp.float32),    # running max
            pltpu.VMEM((tile, 1), jnp.float32),    # running sum
            pltpu.VMEM((tile, hs), jnp.float32),   # per-head attention accumulator
            pltpu.VMEM((tile, D), jnp.float32),    # fused out-projection accumulator
        ],
        compiler_params=pltpu.CompilerParams(
            dimension_semantics=("parallel", "parallel", "arbitrary", "arbitrary"),
            vmem_limit_bytes=48 * 1024 * 1024),
    )(q, k, v, wout_h, bout2)
    return out


def reference(x, wqkv, bqkv, wout, bout, n_heads):
    """Pure-JAX f32 mirror of the PyTorch forward (interleaved-pair RoPE) for validation."""
    B, L, D = x.shape
    hs = D // n_heads
    qkv = x @ wqkv + bqkv
    q, k, v = qkv[..., :D], qkv[..., D:2 * D], qkv[..., 2 * D:]

    def to_heads(t):
        return t.reshape(B, L, n_heads, hs).transpose(0, 2, 1, 3)

    q, k, v = to_heads(q), to_heads(k), to_heads(v)

    inv = 1.0 / (10000.0 ** (jnp.arange(0, hs, 2, dtype=jnp.float32) / hs))
    pos = jnp.arange(L, dtype=jnp.float32)
    f = jnp.repeat(pos[:, None] * inv[None, :], 2, axis=-1)   # interleaved (L, hs)
    cos, sin = jnp.cos(f), jnp.sin(f)

    def rot_half(t):
        t2 = t.reshape(*t.shape[:-1], hs // 2, 2)
        x1, x2 = t2[..., 0], t2[..., 1]
        return jnp.stack([-x2, x1], axis=-1).reshape(t.shape)

    q = q * cos + rot_half(q) * sin
    k = k * cos + rot_half(k) * sin

    s = jnp.einsum("bhqd,bhkd->bhqk", q, k) / jnp.sqrt(float(hs))
    mask = jnp.tril(jnp.ones((L, L), bool))
    s = jnp.where(mask, s, -jnp.inf)
    p = jax.nn.softmax(s, axis=-1)
    o = jnp.einsum("bhqk,bhkd->bhqd", p, v)
    o = o.transpose(0, 2, 1, 3).reshape(B, L, D)
    return o @ wout + bout


if __name__ == "__main__":
    B, L, d_model, n_heads = 2, 8, 32, 4

    key = jax.random.PRNGKey(0)
    k1, k2, k3, k4, k5 = jax.random.split(key, 5)
    bound = 1.0 / (d_model ** 0.5)
    x = jax.random.normal(k1, (B, L, d_model), jnp.float32)
    wqkv = jax.random.uniform(k2, (d_model, 3 * d_model), jnp.float32, -bound, bound)
    bqkv = jax.random.uniform(k3, (3 * d_model,), jnp.float32, -bound, bound)
    wout = jax.random.uniform(k4, (d_model, d_model), jnp.float32, -bound, bound)
    bout = jax.random.uniform(k5, (d_model,), jnp.float32, -bound, bound)

    out = mha_with_rope(x, wqkv, bqkv, wout, bout, n_heads)
    out = jax.block_until_ready(out)

    ref = reference(x, wqkv, bqkv, wout, bout, n_heads)
    assert out.shape == (B, L, d_model)
    # bf16 MXU operands + approx reciprocal -> compare with loose tolerance vs f32 reference.
    np.testing.assert_allclose(np.asarray(out), np.asarray(ref), rtol=3e-2, atol=3e-2)
    print("KERNEL_OK")
</pallas_src>

<mosaic_0001>
module attributes {stable_mosaic.version = 11 : i64} {
  func.func @qkv_rope_kernel(%arg0: i32, %arg1: i32, %arg2: i32, %arg3: memref<1x8x32xbf16, #tpu.memory_space<vmem>>, %arg4: memref<1x32x24xbf16, #tpu.memory_space<vmem>>, %arg5: memref<1x1x24xf32, #tpu.memory_space<vmem>>, %arg6: memref<8x4xf32, #tpu.memory_space<vmem>>, %arg7: memref<8x4xf32, #tpu.memory_space<vmem>>, %arg8: memref<1x1x8x8xbf16, #tpu.memory_space<vmem>>, %arg9: memref<1x1x8x8xbf16, #tpu.memory_space<vmem>>, %arg10: memref<1x1x8x8xbf16, #tpu.memory_space<vmem>>) attributes {dimension_semantics = [#tpu.dimension_semantics<parallel>, #tpu.dimension_semantics<parallel>, #tpu.dimension_semantics<parallel>], iteration_bounds = array<i64: 2, 1, 4>, scalar_prefetch = 0 : i64, scratch_operands = 0 : i64, tpu.core_type = #tpu.core_type<tc>, window_params = [{transform_indices = @transform_0, window_bounds = array<i64: 1, 8, 32>}, {transform_indices = @transform_1, window_bounds = array<i64: 1, 32, 24>}, {transform_indices = @transform_2, window_bounds = array<i64: 1, 1, 24>}, {transform_indices = @transform_3, window_bounds = array<i64: 8, 4>}, {transform_indices = @transform_4, window_bounds = array<i64: 8, 4>}, {transform_indices = @transform_5, window_bounds = array<i64: 1, 1, 8, 8>}, {transform_indices = @transform_6, window_bounds = array<i64: 1, 1, 8, 8>}, {transform_indices = @transform_7, window_bounds = array<i64: 1, 1, 8, 8>}]} {
    %c0 = arith.constant 0 : index
    %c0_0 = arith.constant 0 : index
    %c0_1 = arith.constant 0 : index
    %0 = vector.load %arg3[%c0, %c0_0, %c0_1] : memref<1x8x32xbf16, #tpu.memory_space<vmem>>, vector<1x8x32xbf16>
    %1 = vector.shape_cast %0 : vector<1x8x32xbf16> to vector<8x32xbf16>
    %c0_2 = arith.constant 0 : index
    %c0_3 = arith.constant 0 : index
    %c0_4 = arith.constant 0 : index
    %2 = vector.load %arg4[%c0_2, %c0_3, %c0_4] : memref<1x32x24xbf16, #tpu.memory_space<vmem>>, vector<1x32x24xbf16>
    %3 = vector.shape_cast %2 : vector<1x32x24xbf16> to vector<32x24xbf16>
    %cst = arith.constant dense<0.000000e+00> : vector<8x24xf32>
    %4 = tpu.matmul %1, %3, %cst {dimension_numbers = #tpu.dot_dimension_numbers<[1], [0], [0], [1], [0, 0, 1, 1], [], []>} : vector<8x32xbf16>, vector<32x24xbf16>, vector<8x24xf32> -> vector<8x24xf32>
    %c0_5 = arith.constant 0 : index
    %c0_6 = arith.constant 0 : index
    %c0_7 = arith.constant 0 : index
    %5 = vector.load %arg5[%c0_5, %c0_6, %c0_7] : memref<1x1x24xf32, #tpu.memory_space<vmem>>, vector<1x1x24xf32>
    %6 = vector.shape_cast %5 : vector<1x1x24xf32> to vector<1x24xf32>
    %7 = vector.broadcast %6 : vector<1x24xf32> to vector<8x24xf32>
    %8 = arith.addf %4, %7 : vector<8x24xf32>
    %9 = vector.extract_strided_slice %8 {offsets = [0, 0], sizes = [8, 8], strides = [1, 1]} : vector<8x24xf32> to vector<8x8xf32>
    %10 = vector.extract_strided_slice %8 {offsets = [0, 8], sizes = [8, 8], strides = [1, 1]} : vector<8x24xf32> to vector<8x8xf32>
    %11 = vector.extract_strided_slice %8 {offsets = [0, 16], sizes = [8, 8], strides = [1, 1]} : vector<8x24xf32> to vector<8x8xf32>
    %c0_8 = arith.constant 0 : index
    %c0_9 = arith.constant 0 : index
    %12 = vector.load %arg6[%c0_8, %c0_9] : memref<8x4xf32, #tpu.memory_space<vmem>>, vector<8x4xf32>
    %c0_10 = arith.constant 0 : index
    %c0_11 = arith.constant 0 : index
    %13 = vector.load %arg7[%c0_10, %c0_11] : memref<8x4xf32, #tpu.memory_space<vmem>>, vector<8x4xf32>
    %14 = vector.extract_strided_slice %9 {offsets = [0, 0], sizes = [8, 4], strides = [1, 1]} : vector<8x8xf32> to vector<8x4xf32>
    %15 = vector.extract_strided_slice %9 {offsets = [0, 4], sizes = [8, 4], strides = [1, 1]} : vector<8x8xf32> to vector<8x4xf32>
    %16 = arith.mulf %14, %12 : vector<8x4xf32>
    %17 = arith.mulf %15, %13 : vector<8x4xf32>
    %18 = arith.subf %16, %17 : vector<8x4xf32>
    %19 = arith.mulf %15, %12 : vector<8x4xf32>
    %20 = arith.mulf %14, %13 : vector<8x4xf32>
    %21 = arith.addf %19, %20 : vector<8x4xf32>
    %22 = tpu.concatenate %18, %21 in 1 : vector<8x4xf32>, vector<8x4xf32> -> vector<8x8xf32>
    %cst_12 = arith.constant 0.353553385 : f32
    %23 = vector.broadcast %cst_12 : f32 to vector<8x8xf32>
    %24 = arith.mulf %22, %23 : vector<8x8xf32>
    %25 = arith.truncf %24 : vector<8x8xf32> to vector<8x8xbf16>
    %c0_13 = arith.constant 0 : index
    %c0_14 = arith.constant 0 : index
    %c0_15 = arith.constant 0 : index
    %c0_16 = arith.constant 0 : index
    %26 = vector.load %arg8[%c0_13, %c0_14, %c0_15, %c0_16] : memref<1x1x8x8xbf16, #tpu.memory_space<vmem>>, vector<1x1x8x8xbf16>
    %27 = vector.shape_cast %26 : vector<1x1x8x8xbf16> to vector<8x8xbf16>
    %28 = vector.shape_cast %25 : vector<8x8xbf16> to vector<1x1x8x8xbf16>
    tpu.vector_store %arg8[%c0_13, %c0_14, %c0_15, %c0_16], %28 {strides = array<i32>} : memref<1x1x8x8xbf16, #tpu.memory_space<vmem>>, vector<1x1x8x8xbf16>,
    %29 = vector.extract_strided_slice %10 {offsets = [0, 0], sizes = [8, 4], strides = [1, 1]} : vector<8x8xf32> to vector<8x4xf32>
    %30 = vector.extract_strided_slice %10 {offsets = [0, 4], sizes = [8, 4], strides = [1, 1]} : vector<8x8xf32> to vector<8x4xf32>
    %31 = arith.mulf %29, %12 : vector<8x4xf32>
    %32 = arith.mulf %30, %13 : vector<8x4xf32>
    %33 = arith.subf %31, %32 : vector<8x4xf32>
    %34 = arith.mulf %30, %12 : vector<8x4xf32>
    %35 = arith.mulf %29, %13 : vector<8x4xf32>
    %36 = arith.addf %34, %35 : vector<8x4xf32>
    %37 = tpu.concatenate %33, %36 in 1 : vector<8x4xf32>, vector<8x4xf32> -> vector<8x8xf32>
    %38 = arith.truncf %37 : vector<8x8xf32> to vector<8x8xbf16>
    %c0_17 = arith.constant 0 : index
    %c0_18 = arith.constant 0 : index
    %c0_19 = arith.constant 0 : index
    %c0_20 = arith.constant 0 : index
    %39 = vector.load %arg9[%c0_17, %c0_18, %c0_19, %c0_20] : memref<1x1x8x8xbf16, #tpu.memory_space<vmem>>, vector<1x1x8x8xbf16>
    %40 = vector.shape_cast %39 : vector<1x1x8x8xbf16> to vector<8x8xbf16>
    %41 = vector.shape_cast %38 : vector<8x8xbf16> to vector<1x1x8x8xbf16>
    tpu.vector_store %arg9[%c0_17, %c0_18, %c0_19, %c0_20], %41 {strides = array<i32>} : memref<1x1x8x8xbf16, #tpu.memory_space<vmem>>, vector<1x1x8x8xbf16>,
    %42 = arith.truncf %11 : vector<8x8xf32> to vector<8x8xbf16>
    %c0_21 = arith.constant 0 : index
    %c0_22 = arith.constant 0 : index
    %c0_23 = arith.constant 0 : index
    %c0_24 = arith.constant 0 : index
    %43 = vector.load %arg10[%c0_21, %c0_22, %c0_23, %c0_24] : memref<1x1x8x8xbf16, #tpu.memory_space<vmem>>, vector<1x1x8x8xbf16>
    %44 = vector.shape_cast %43 : vector<1x1x8x8xbf16> to vector<8x8xbf16>
    %45 = vector.shape_cast %42 : vector<8x8xbf16> to vector<1x1x8x8xbf16>
    tpu.vector_store %arg10[%c0_21, %c0_22, %c0_23, %c0_24], %45 {strides = array<i32>} : memref<1x1x8x8xbf16, #tpu.memory_space<vmem>>, vector<1x1x8x8xbf16>,
    return
  }
  func.func @transform_0(%arg0: i32, %arg1: i32, %arg2: i32) -> (i32, i32, i32) {
    %c0_i32 = arith.constant 0 : i32
    %c0_i32_0 = arith.constant 0 : i32
    return %arg0, %arg1, %c0_i32 : i32, i32, i32
  }
  func.func @transform_1(%arg0: i32, %arg1: i32, %arg2: i32) -> (i32, i32, i32) {
    %c0_i32 = arith.constant 0 : i32
    %c0_i32_0 = arith.constant 0 : i32
    %c0_i32_1 = arith.constant 0 : i32
    return %arg2, %c0_i32, %c0_i32_0 : i32, i32, i32
  }
  func.func @transform_2(%arg0: i32, %arg1: i32, %arg2: i32) -> (i32, i32, i32) {
    %c0_i32 = arith.constant 0 : i32
    %c0_i32_0 = arith.constant 0 : i32
    %c0_i32_1 = arith.constant 0 : i32
    return %arg2, %c0_i32, %c0_i32_0 : i32, i32, i32
  }
  func.func @transform_3(%arg0: i32, %arg1: i32, %arg2: i32) -> (i32, i32) {
    %c0_i32 = arith.constant 0 : i32
    %c0_i32_0 = arith.constant 0 : i32
    return %arg1, %c0_i32 : i32, i32
  }
  func.func @transform_4(%arg0: i32, %arg1: i32, %arg2: i32) -> (i32, i32) {
    %c0_i32 = arith.constant 0 : i32
    %c0_i32_0 = arith.constant 0 : i32
    return %arg1, %c0_i32 : i32, i32
  }
  func.func @transform_5(%arg0: i32, %arg1: i32, %arg2: i32) -> (i32, i32, i32, i32) {
    %c0_i32 = arith.constant 0 : i32
    %c0_i32_0 = arith.constant 0 : i32
    return %arg0, %arg2, %arg1, %c0_i32 : i32, i32, i32, i32
  }
  func.func @transform_6(%arg0: i32, %arg1: i32, %arg2: i32) -> (i32, i32, i32, i32) {
    %c0_i32 = arith.constant 0 : i32
    %c0_i32_0 = arith.constant 0 : i32
    return %arg0, %arg2, %arg1, %c0_i32 : i32, i32, i32, i32
  }
  func.func @transform_7(%arg0: i32, %arg1: i32, %arg2: i32) -> (i32, i32, i32, i32) {
    %c0_i32 = arith.constant 0 : i32
    %c0_i32_0 = arith.constant 0 : i32
    return %arg0, %arg2, %arg1, %c0_i32 : i32, i32, i32, i32
  }
}

</mosaic_0001>

<llo_original>
// kernel: tpu_custom_call.1
$region0: #{tpu_custom_call.1}
  #allocation0 [shape = 'u32[]', space=smem, size = 0x4, offset = 0x4, fixed_abs, tag = 'smem constant byte address 0x4 - core index']
  #allocation1 [shape = 'u32[144,128]{1,0:T(1,128)}', space=vmem, size = 0x12000, scoped, tag = 'internal scratch']
  %s0 = inlined_call_operand.vmem [shape: bf16[2,8,32], index: 0, kind: input, shape index: {}]
  %s1 = inlined_call_operand.vmem [shape: bf16[4,32,24], index: 1, kind: input, shape index: {}]
  %s2 = inlined_call_operand.vmem [shape: f32[4,1,24], index: 2, kind: input, shape index: {}]
  %s3 = inlined_call_operand.vmem [shape: f32[8,4], index: 3, kind: input, shape index: {}]
  %s4 = inlined_call_operand.vmem [shape: f32[8,4], index: 4, kind: input, shape index: {}]
  %s5 = inlined_call_operand.hbm [shape: bf16[2,4,8,8], index: 5, kind: output, shape index: {0}]
  %s6 = inlined_call_operand.hbm [shape: bf16[2,4,8,8], index: 6, kind: output, shape index: {1}]
  %s7 = inlined_call_operand.hbm [shape: bf16[2,4,8,8], index: 7, kind: output, shape index: {2}]
  %8 = xla_tuple %s5, %s6, %s7
  %s9 = sld [smem:[#allocation0]]
  $region69: #{tpu_custom_call.1} parent=0
    _
  %s11 = ssub.s32 1, %s9
  %s12 = scalar_select 0, %s11, %s9
  $region1: #{tpu_custom_call.1} parent=0
    #allocation2 [shape = 'u8[4096]{0}', space=vmem, size = 0x1000, scoped, tag = 'output window, operand 0']
    #allocation3 [shape = 's32[2]{0}', space=sflag, size = 0x8, scoped, tag = 'scoped memory for tpu_custom_call.1']
    #allocation4 [shape = 'u8[4096]{0}', space=vmem, size = 0x1000, scoped, tag = 'output window, operand 1']
    #allocation5 [shape = 's32[2]{0}', space=sflag, size = 0x8, scoped, tag = 'scoped memory for tpu_custom_call.1']
    #allocation6 [shape = 'u8[4096]{0}', space=vmem, size = 0x1000, scoped, tag = 'output window, operand 2']
    %13 = vsyncpa [#allocation3], 0
    %s14 = scalar_lea.sflag [#allocation3], 1
    %15 = vsyncpa %s14, 0
    %16 = vsyncpa [#allocation5], 0
    %s17 = scalar_lea.sflag [#allocation5], 1
    %18 = vsyncpa %s17, 0
    loop: start=0, step=1, limit=10
    $region2: #{tpu_custom_call.1} parent=1 // loop_pre_header
      _
    $region3: #{tpu_custom_call.1} parent=1 // loop_header
      %s20 = sphi 0, %s24
      %p21 = scmp.ge.s32.totalorder %s20, 10
      %s27 = sphi 0, %s46
      %s28 = sphi 0, %s42
      %s29 = sphi 0, %s38
      %s30 = sphi 0, %s27
      %s31 = sphi 0, %s28
      %s32 = sphi 0, %s29
      %s33 = sphi 0, %s30
      %s34 = sphi 0, %s31
      %s35 = sphi 0, %s32
      %s51 = sphi 0, %s53
      %s54 = sphi 0, %s51
      %s55 = sphi 0, %s54
      %s71 = sphi 0, %s55
      %s77 = sphi 0, %s79
      %s80 = sphi 0, %s77
      %s81 = sphi 0, %s80
      %s97 = sphi 0, %s81
      %s103 = sphi 0, %s105
      %s106 = sphi 0, %s103
      %s107 = sphi 0, %s106
      %s123 = sphi 0, %s107
      %s129 = sphi 0, %s131
      %s132 = sphi 0, %s129
      %s133 = sphi 0, %s132
      %s149 = sphi 0, %s133
      %s155 = sphi 0, %s157
      %s158 = sphi 0, %s155
      %s159 = sphi 0, %s158
      %s175 = sphi 0, %s159
      %s185 = sphi 0, %s187
      %s188 = sphi 0, %s185
      %s189 = sphi 0, %s188
      %s205 = sphi 0, %s189
      %s215 = sphi 0, %s217
      %s218 = sphi 0, %s215
      %s219 = sphi 0, %s218
      %s235 = sphi 0, %s219
      %s245 = sphi 0, %s247
      %s248 = sphi 0, %s245
      %s249 = sphi 0, %s248
      %s265 = sphi 0, %s249
    $region4: #{tpu_custom_call.1} parent=1 // loop_header_branch
      %23 = sbr.rel (%p21) target = $region8
    $region5: #{tpu_custom_call.1} parent=1 // loop_body
      %s25 = ssub.s32 %s20, 1
      %s26 = ssub.s32 %s20, 2
      %s36 = sadd.s32 1, %s29
      %p37 = scmp.ge.s32.totalorder %s36, 4
      %s38 = scalar_select %p37, 0, %s36
      %s39 = sadd.s32 1, %s28
      %s40 = scalar_select %p37, %s39, %s28
      %p41 = scmp.ge.s32.totalorder %s40, 1
      %s42 = scalar_select %p41, 0, %s40
      %s43 = sadd.s32 1, %s27
      %s44 = scalar_select %p41, %s43, %s27
      %p45 = scmp.ge.s32.totalorder %s44, 2
      %s46 = scalar_select %p45, 0, %s44
      %s47 = ssub.s32 %s27, %s46
      %s48 = ssub.s32 %s28, %s42
      %s49 = sor.u32 %s47, %s48
      %p50 = scmp.eq.s32.totalorder %s49, 0
      %s52 = sadd.s32 %s51, 1
      %s53 = scalar_select %p50, %s51, %s52
      %p56 = pneg %p50
      %p57 = scmp.eq.s32.totalorder %s20, 7
      %p58 = por %p56, %p57
      %p59 = scmp.ne.s32.totalorder %s51, %s54
      %p60 = scmp.eq.s32.totalorder %s20, 0
      %p61 = por %p59, %p60
      %p62 = scmp.ne.s32.totalorder %s51, %s54
      %p63 = scmp.eq.s32.totalorder %s25, 7
      %p64 = por %p62, %p63
      %p65 = scmp.ne.s32.totalorder %s54, %s55
      %p66 = scmp.eq.s32.totalorder %s25, 0
      %p67 = por %p65, %p66
      %p68 = scmp.ne.s32.totalorder %s54, %s55
      %p69 = scmp.eq.s32.totalorder %s26, 7
      %p70 = por %p68, %p69
      %p72 = scmp.ne.s32.totalorder %s55, %s71
      %p73 = scmp.eq.s32.totalorder %s26, 0
      %p74 = por %p72, %p73
      %s75 = ssub.s32 %s29, %s38
      %p76 = scmp.eq.s32.totalorder %s75, 0
      %s78 = sadd.s32 %s77, 1
      %s79 = scalar_select %p76, %s77, %s78
      %p82 = pneg %p76
      %p83 = scmp.eq.s32.totalorder %s20, 7
      %p84 = por %p82, %p83
      %p85 = scmp.ne.s32.totalorder %s77, %s80
      %p86 = scmp.eq.s32.totalorder %s20, 0
      %p87 = por %p85, %p86
      %p88 = scmp.ne.s32.totalorder %s77, %s80
      %p89 = scmp.eq.s32.totalorder %s25, 7
      %p90 = por %p88, %p89
      %p91 = scmp.ne.s32.totalorder %s80, %s81
      %p92 = scmp.eq.s32.totalorder %s25, 0
      %p93 = por %p91, %p92
      %p94 = scmp.ne.s32.totalorder %s80, %s81
      %p95 = scmp.eq.s32.totalorder %s26, 7
      %p96 = por %p94, %p95
      %p98 = scmp.ne.s32.totalorder %s81, %s97
      %p99 = scmp.eq.s32.totalorder %s26, 0
      %p100 = por %p98, %p99
      %s101 = ssub.s32 %s29, %s38
      %p102 = scmp.eq.s32.totalorder %s101, 0
      %s104 = sadd.s32 %s103, 1
      %s105 = scalar_select %p102, %s103, %s104
      %p108 = pneg %p102
      %p109 = scmp.eq.s32.totalorder %s20, 7
      %p110 = por %p108, %p109
      %p111 = scmp.ne.s32.totalorder %s103, %s106
      %p112 = scmp.eq.s32.totalorder %s20, 0
      %p113 = por %p111, %p112
      %p114 = scmp.ne.s32.totalorder %s103, %s106
      %p115 = scmp.eq.s32.totalorder %s25, 7
      %p116 = por %p114, %p115
      %p117 = scmp.ne.s32.totalorder %s106, %s107
      %p118 = scmp.eq.s32.totalorder %s25, 0
      %p119 = por %p117, %p118
      %p120 = scmp.ne.s32.totalorder %s106, %s107
      %p121 = scmp.eq.s32.totalorder %s26, 7
      %p122 = por %p120, %p121
      %p124 = scmp.ne.s32.totalorder %s107, %s123
      %p125 = scmp.eq.s32.totalorder %s26, 0
      %p126 = por %p124, %p125
      %s127 = ssub.s32 %s28, %s42
      %p128 = scmp.eq.s32.totalorder %s127, 0
      %s130 = sadd.s32 %s129, 1
      %s131 = scalar_select %p128, %s129, %s130
      %p134 = pneg %p128
      %p135 = scmp.eq.s32.totalorder %s20, 7
      %p136 = por %p134, %p135
      %p137 = scmp.ne.s32.totalorder %s129, %s132
      %p138 = scmp.eq.s32.totalorder %s20, 0
      %p139 = por %p137, %p138
      %p140 = scmp.ne.s32.totalorder %s129, %s132
      %p141 = scmp.eq.s32.totalorder %s25, 7
      %p142 = por %p140, %p141
      %p143 = scmp.ne.s32.totalorder %s132, %s133
      %p144 = scmp.eq.s32.totalorder %s25, 0
      %p145 = por %p143, %p144
      %p146 = scmp.ne.s32.totalorder %s132, %s133
      %p147 = scmp.eq.s32.totalorder %s26, 7
      %p148 = por %p146, %p147
      %p150 = scmp.ne.s32.totalorder %s133, %s149
      %p151 = scmp.eq.s32.totalorder %s26, 0
      %p152 = por %p150, %p151
      %s153 = ssub.s32 %s28, %s42
      %p154 = scmp.eq.s32.totalorder %s153, 0
      %s156 = sadd.s32 %s155, 1
      %s157 = scalar_select %p154, %s155, %s156
      %p160 = pneg %p154
      %p161 = scmp.eq.s32.totalorder %s20, 7
      %p162 = por %p160, %p161
      %p163 = scmp.ne.s32.totalorder %s155, %s158
      %p164 = scmp.eq.s32.totalorder %s20, 0
      %p165 = por %p163, %p164
      %p166 = scmp.ne.s32.totalorder %s155, %s158
      %p167 = scmp.eq.s32.totalorder %s25, 7
      %p168 = por %p166, %p167
      %p169 = scmp.ne.s32.totalorder %s158, %s159
      %p170 = scmp.eq.s32.totalorder %s25, 0
      %p171 = por %p169, %p170
      %p172 = scmp.ne.s32.totalorder %s158, %s159
      %p173 = scmp.eq.s32.totalorder %s26, 7
      %p174 = por %p172, %p173
      %p176 = scmp.ne.s32.totalorder %s159, %s175
      %p177 = scmp.eq.s32.totalorder %s26, 0
      %p178 = por %p176, %p177
      %s179 = ssub.s32 %s27, %s46
      %s180 = ssub.s32 %s29, %s38
      %s181 = sor.u32 %s179, %s180
      %s182 = ssub.s32 %s28, %s42
      %s183 = sor.u32 %s181, %s182
      %p184 = scmp.eq.s32.totalorder %s183, 0
      %s186 = sadd.s32 %s185, 1
      %s187 = scalar_select %p184, %s185, %s186
      %p190 = pneg %p184
      %p191 = scmp.eq.s32.totalorder %s20, 7
      %p192 = por %p190, %p191
      %p193 = scmp.ne.s32.totalorder %s185, %s188
      %p194 = scmp.eq.s32.totalorder %s20, 0
      %p195 = por %p193, %p194
      %p196 = scmp.ne.s32.totalorder %s185, %s188
      %p197 = scmp.eq.s32.totalorder %s25, 7
      %p198 = por %p196, %p197
      %p199 = scmp.ne.s32.totalorder %s188, %s189
      %p200 = scmp.eq.s32.totalorder %s25, 0
      %p201 = por %p199, %p200
      %p202 = scmp.ne.s32.totalorder %s188, %s189
      %p203 = scmp.eq.s32.totalorder %s26, 7
      %p204 = por %p202, %p203
      %p206 = scmp.ne.s32.totalorder %s189, %s205
      %p207 = scmp.eq.s32.totalorder %s26, 0
      %p208 = por %p206, %p207
      %s209 = ssub.s32 %s27, %s46
      %s210 = ssub.s32 %s29, %s38
      %s211 = sor.u32 %s209, %s210
      %s212 = ssub.s32 %s28, %s42
      %s213 = sor.u32 %s211, %s212
      %p214 = scmp.eq.s32.totalorder %s213, 0
      %s216 = sadd.s32 %s215, 1
      %s217 = scalar_select %p214, %s215, %s216
      %p220 = pneg %p214
      %p221 = scmp.eq.s32.totalorder %s20, 7
      %p222 = por %p220, %p221
      %p223 = scmp.ne.s32.totalorder %s215, %s218
      %p224 = scmp.eq.s32.totalorder %s20, 0
      %p225 = por %p223, %p224
      %p226 = scmp.ne.s32.totalorder %s215, %s218
      %p227 = scmp.eq.s32.totalorder %s25, 7
      %p228 = por %p226, %p227
      %p229 = scmp.ne.s32.totalorder %s218, %s219
      %p230 = scmp.eq.s32.totalorder %s25, 0
      %p231 = por %p229, %p230
      %p232 = scmp.ne.s32.totalorder %s218, %s219
      %p233 = scmp.eq.s32.totalorder %s26, 7
      %p234 = por %p232, %p233
      %p236 = scmp.ne.s32.totalorder %s219, %s235
      %p237 = scmp.eq.s32.totalorder %s26, 0
      %p238 = por %p236, %p237
      %s239 = ssub.s32 %s27, %s46
      %s240 = ssub.s32 %s29, %s38
      %s241 = sor.u32 %s239, %s240
      %s242 = ssub.s32 %s28, %s42
      %s243 = sor.u32 %s241, %s242
      %p244 = scmp.eq.s32.totalorder %s243, 0
      %s246 = sadd.s32 %s245, 1
      %s247 = scalar_select %p244, %s245, %s246
      %p250 = pneg %p244
      %p251 = scmp.eq.s32.totalorder %s20, 7
      %p252 = por %p250, %p251
      %p253 = scmp.ne.s32.totalorder %s245, %s248
      %p254 = scmp.eq.s32.totalorder %s20, 0
      %p255 = por %p253, %p254
      %p256 = scmp.ne.s32.totalorder %s245, %s248
      %p257 = scmp.eq.s32.totalorder %s25, 7
      %p258 = por %p256, %p257
      %p259 = scmp.ne.s32.totalorder %s248, %s249
      %p260 = scmp.eq.s32.totalorder %s25, 0
      %p261 = por %p259, %p260
      %p262 = scmp.ne.s32.totalorder %s248, %s249
      %p263 = scmp.eq.s32.totalorder %s26, 7
      %p264 = por %p262, %p263
      %p266 = scmp.ne.s32.totalorder %s249, %s265
      %p267 = scmp.eq.s32.totalorder %s26, 0
      %p268 = por %p266, %p267
      %p269 = scmp.le.s32.totalorder 1, %s20
      %p270 = scmp.lt.s32.totalorder %s20, 9
      %p271 = pnand %p269, %p270
      %p272 = pneg %p271
      // Predicated region
      $region9: #{tpu_custom_call.1} parent=5 // pred_check
        _
      $region10: #{tpu_custom_call.1} parent=5 // pred_check_branch
        %274 = sbr.rel (%p271) target = $region12
      $region11: #{tpu_custom_call.1} parent=5 // pred_region
        %s275 = ssub.s32 %s20, 1
        // Predicated region
        $region13: #{tpu_custom_call.1} parent=11 // pred_check
          %p276 = pneg %p145
        $region14: #{tpu_custom_call.1} parent=11 // pred_check_branch
          %278 = sbr.rel (%p276) target = $region16
        $region15: #{tpu_custom_call.1} parent=11 // pred_region
          %p279 = scmp.lt.s32.totalorder %s31, 0
          %s280 = scalar_select %p279, %s31, 0
          %s281 = smul.addr %s280, 8
          %s282 = scalar_lea.vmem %s3, %s281
        $region16: #{tpu_custom_call.1} parent=11 // pred_fallthru
          _
        // Predicated region
        $region17: #{tpu_custom_call.1} parent=11 // pred_check
          %p283 = pneg %p171
        $region18: #{tpu_custom_call.1} parent=11 // pred_check_branch
          %285 = sbr.rel (%p283) target = $region20
        $region19: #{tpu_custom_call.1} parent=11 // pred_region
          %p286 = scmp.lt.s32.totalorder %s31, 0
          %s287 = scalar_select %p286, %s31, 0
          %s288 = smul.addr %s287, 8
          %s289 = scalar_lea.vmem %s4, %s288
        $region20: #{tpu_custom_call.1} parent=11 // pred_fallthru
          _
      $region12: #{tpu_custom_call.1} parent=5 // pred_fallthru
        _
      %p290 = scmp.lt.s32.totalorder %s20, 8
      // Predicated region
      $region21: #{tpu_custom_call.1} parent=5 // pred_check
        %p291 = pneg %p290
      $region22: #{tpu_custom_call.1} parent=5 // pred_check_branch
        %293 = sbr.rel (%p291) target = $region24
      $region23: #{tpu_custom_call.1} parent=5 // pred_region
        // Predicated region
        $region25: #{tpu_custom_call.1} parent=23 // pred_check
          %p294 = pneg %p61
        $region26: #{tpu_custom_call.1} parent=23 // pred_check_branch
          %296 = sbr.rel (%p294) target = $region28
        $region27: #{tpu_custom_call.1} parent=23 // pred_region
          %p297 = scmp.lt.s32.totalorder %s27, 1
          %s298 = scalar_select %p297, %s27, 1
          %p299 = scmp.lt.s32.totalorder %s28, 0
          %s300 = scalar_select %p299, %s28, 0
          %s301 = sadd.s32 %s300, %s298
          %s302 = smul.addr %s301, 4
          %s303 = scalar_lea.vmem %s0, %s302
        $region28: #{tpu_custom_call.1} parent=23 // pred_fallthru
          _
        // Predicated region
        $region29: #{tpu_custom_call.1} parent=23 // pred_check
          %p304 = pneg %p87
        $region30: #{tpu_custom_call.1} parent=23 // pred_check_branch
          %306 = sbr.rel (%p304) target = $region32
        $region31: #{tpu_custom_call.1} parent=23 // pred_region
          %p307 = scmp.lt.s32.totalorder %s29, 3
          %s308 = scalar_select %p307, %s29, 3
          %s309 = smul.addr %s308, 4
          %s310 = smul.addr %s309, 4
          %s311 = scalar_lea.vmem %s1, %s310
        $region32: #{tpu_custom_call.1} parent=23 // pred_fallthru
          _
        // Predicated region
        $region33: #{tpu_custom_call.1} parent=23 // pred_check
          %p312 = pneg %p113
        $region34: #{tpu_custom_call.1} parent=23 // pred_check_branch
          %314 = sbr.rel (%p312) target = $region36
        $region35: #{tpu_custom_call.1} parent=23 // pred_region
          %p315 = scmp.lt.s32.totalorder %s29, 3
          %s316 = scalar_select %p315, %s29, 3
          %s317 = scalar_lea.vmem %s2, %s316
        $region36: #{tpu_custom_call.1} parent=23 // pred_fallthru
          _
      $region24: #{tpu_custom_call.1} parent=5 // pred_fallthru
        _
      %p318 = scmp.le.s32.totalorder 1, %s20
      %p319 = scmp.lt.s32.totalorder %s20, 9
      %p320 = pnand %p318, %p319
      %p321 = pneg %p320
      // Predicated region
      $region37: #{tpu_custom_call.1} parent=5 // pred_check
        _
      $region38: #{tpu_custom_call.1} parent=5 // pred_check_branch
        %323 = sbr.rel (%p320) target = $region40
      $region39: #{tpu_custom_call.1} parent=5 // pred_region
        %s324 = ssub.s32 %s20, 1
        %p325 = scmp.lt.s32.totalorder %s30, 1
        %s326 = scalar_select %p325, %s30, 1
        %p327 = scmp.lt.s32.totalorder %s31, 0
        %s328 = scalar_select %p327, %s31, 0
        %s329 = sadd.s32 %s328, %s326
        %s330 = smul.addr %s329, 4
        %s331 = scalar_lea.vmem %s0, %s330
        %p332 = pneg %p67
        %p333 = pneg %p64
        %p334 = scmp.lt.s32.totalorder %s32, 3
        %s335 = scalar_select %p334, %s32, 3
        %s336 = smul.addr %s335, 4
        %s337 = smul.addr %s336, 4
        %s338 = scalar_lea.vmem %s1, %s337
        %p339 = pneg %p93
        %p340 = pneg %p90
        %p341 = scmp.lt.s32.totalorder %s32, 3
        %s342 = scalar_select %p341, %s32, 3
        %s343 = scalar_lea.vmem %s2, %s342
        %p344 = pneg %p119
        %p345 = pneg %p116
        %p346 = scmp.lt.s32.totalorder %s31, 0
        %s347 = scalar_select %p346, %s31, 0
        %s348 = smul.addr %s347, 8
        %s349 = scalar_lea.vmem %s3, %s348
        %p350 = pneg %p145
        %p351 = pneg %p142
        %p352 = scmp.lt.s32.totalorder %s31, 0
        %s353 = scalar_select %p352, %s31, 0
        %s354 = smul.addr %s353, 8
        %s355 = scalar_lea.vmem %s4, %s354
        %p356 = pneg %p171
        %p357 = pneg %p168
        %p358 = pneg %p201
        %p359 = pneg %p198
        %s360 = sand.u32 %s188, 1
        %s361 = scalar_lea.sflag [#allocation3], %s360
        %s362 = sand.u32 %s188, 1
        %s363 = smul.addr %s362, 4
        %s364 = scalar_lea.vmem [#allocation2], %s363
        %p365 = pneg %p231
        %p366 = pneg %p228
        %s367 = sand.u32 %s25, 1
        %s368 = scalar_lea.sflag [#allocation5], %s367
        %s369 = sand.u32 %s218, 1
        %s370 = smul.addr %s369, 4
        %s371 = scalar_lea.vmem [#allocation4], %s370
        %p372 = pneg %p261
        %p373 = pneg %p258
        %s374 = sand.u32 %s25, 1
        %s375 = scalar_lea.sflag [#allocation5], %s374
        %s376 = sand.u32 %s248, 1
        %s377 = smul.addr %s376, 4
        %s378 = scalar_lea.vmem [#allocation6], %s377
        %p379 = scmp.lt.s32.totalorder %s30, 1
        %s380 = scalar_select %p379, %s30, 1
        %p381 = scmp.lt.s32.totalorder %s31, 0
        %s382 = scalar_select %p381, %s31, 0
        %s383 = sadd.s32 %s382, %s380
        %s384 = smul.addr %s383, 4
        %s385 = scalar_lea.vmem %s0, %s384
        %p386 = scmp.lt.s32.totalorder %s32, 3
        %s387 = scalar_select %p386, %s32, 3
        %s388 = smul.addr %s387, 4
        %s389 = smul.addr %s388, 4
        %s390 = scalar_lea.vmem %s1, %s389
        %p391 = scmp.lt.s32.totalorder %s32, 3
        %s392 = scalar_select %p391, %s32, 3
        %s393 = scalar_lea.vmem %s2, %s392
        %p394 = scmp.lt.s32.totalorder %s31, 0
        %s395 = scalar_select %p394, %s31, 0
        %s396 = smul.addr %s395, 8
        %s397 = scalar_lea.vmem %s3, %s396
        %p398 = scmp.lt.s32.totalorder %s31, 0
        %s399 = scalar_select %p398, %s31, 0
        %s400 = smul.addr %s399, 8
        %s401 = scalar_lea.vmem %s4, %s400
        %v403 = vld [vmem:[%s385] sm:$0xf]
        %v404 = vld [vmem:[%s390] sm:$0xf]
        %v405 = vld [vmem:[%s390 + $0x4] sm:$0xf]
        %v406 = vld [vmem:[%s390 + $0x8] sm:$0xf]
        %v407 = vld [vmem:[%s390 + $0xc] sm:$0xf]
        %v408 = vld [vmem:[%s393] sm:$0x1]
        %v410 = vlaneseq
        %v411 = vshrl.u32 %v410, 7
        %v412 = vsub.s32 0, %v411
        %v413 = vrot.slane %v408, %v412
        %v419 = vunpack.c.l.b16 %v404
        %v420 = vunpack.c.l.b16 %v405
        %v421 = vunpack.c.l.b16 %v406
        %v422 = vunpack.c.l.b16 %v407
        %v423 = vpack.c.b16 %v420, %v419
        %v424 = vpack.c.b16 %v422, %v421
        %vm427 = vcmask 261120
        %v429 = vsel %vm427, %v403, 0
        %431 = vmatprep.subr.bf16.mxu0 0
        %432 = vmatpush1.bf16.msra.mxu0 0
        %433 = vmatprep.subr.bf16.mxu0 0
        %434 = vmatpush1.bf16.msra.mxu0 0
        %435 = vmatprep.subr.bf16.mxu0 0
        %436 = vmatpush1.bf16.msra.mxu0 0
        %437 = vmatprep.subr.bf16.mxu0 0
        %438 = vmatpush1.bf16.msra.mxu0 0
        %439 = vmatprep.subr.bf16.mxu0 0
        %440 = vmatpush1.bf16.msra.mxu0 0
        %441 = vmatprep.subr.bf16.mxu0 0
        %442 = vmatpush1.bf16.msra.mxu0 0
        %443 = vmatprep.subr.bf16.mxu0 0
        %444 = vmatpush1.bf16.msra.mxu0 %v424
        %445 = vmatprep.subr.bf16.mxu0 0
        %446 = vmatpush1.bf16.msra.mxu0 %v423
        %447 = vmatprep.subr.bf16.mxu0 0
        %448 = vmatpush2.bf16.msra.mxu0 0
        %449 = vmatprep.subr.bf16.mxu0 0
        %450 = vmatpush2.bf16.msra.mxu0 0
        %451 = vmatprep.subr.bf16.mxu0 0
        %452 = vmatpush2.bf16.msra.mxu0 0
        %453 = vmatprep.subr.bf16.mxu0 0
        %454 = vmatpush2.bf16.msra.mxu0 0
        %455 = vmatprep.subr.bf16.mxu0 0
        %456 = vmatpush2.bf16.msra.mxu0 0
        %457 = vmatprep.subr.bf16.mxu0 0
        %458 = vmatpush2.bf16.msra.mxu0 0
        %459 = vmatprep.subr.bf16.mxu0 0
        %460 = vmatpush2.bf16.msra.mxu0 0
        %461 = vmatprep.subr.bf16.mxu0 0
        %462 = vmatpush2.bf16.msra.mxu0 0
        %463 = vmatprep.mubr.bf16.mxu0 0
        %464 = vmatmul.mubr.bf16.gmra.mxu0 %v429
        %v465 = vpop.f32.mrf.mxu0
        %v466 = vadd.f32 %v413, %v465
        %v467 = vpop.f32.mrf.mxu0
        %v468 = vpop.f32.mrf.mxu0
        %v469 = vpop.f32.mrf.mxu0
        %470 = vdwg.mxu0
        %v471 = vld [vmem:[%s397] sm:$0xff]
        %v472 = vld [vmem:[%s401] sm:$0xff]
        %v473 = vmul.f32 %v466, %v471
        %475 = vrot.lane.b32.xlu0 %v472, 4
        %v476 = vpop.permute.xlu0 %475
        %v478 = vmul.f32 %v466, %v476
        %480 = vrot.lane.b32.xlu0 %v478, 124
        %v481 = vpop.permute.xlu0 %480
        %v483 = vsub.f32 %v473, %v481
        %485 = vrot.lane.b32.xlu0 %v471, 4
        %v486 = vpop.permute.xlu0 %485
        %v488 = vmul.f32 %v466, %v486
        %v489 = vmul.f32 %v466, %v472
        %491 = vrot.lane.b32.xlu0 %v489, 4
        %v492 = vpop.permute.xlu0 %491
        %v494 = vadd.f32 %v488, %v492
        %vm495 = vcmask 31744
        %v496 = vsel %vm495, %v483, %v494
        %v497 = vmul.f32 %v496, 0.35355338
        %v498 = vpack.c.bf16 %v497, %v497
        %vm499 = vcmask 60416
        %500 = vst.msk [vmem:[%s364] sm:$0xf] %vm499, %v498
        %501 = vrot.lane.b32.xlu0 %v471, 8
        %v502 = vpop.permute.xlu0 %501
        %v504 = vmul.f32 %v466, %v502
        %505 = vrot.lane.b32.xlu0 %v472, 12
        %v506 = vpop.permute.xlu0 %505
        %v508 = vmul.f32 %v466, %v506
        %510 = vrot.lane.b32.xlu0 %v508, 124
        %v511 = vpop.permute.xlu0 %510
        %v513 = vsub.f32 %v504, %v511
        %514 = vrot.lane.b32.xlu0 %v471, 12
        %v515 = vpop.permute.xlu0 %514
        %v517 = vmul.f32 %v466, %v515
        %518 = vrot.lane.b32.xlu0 %v472, 8
        %v519 = vpop.permute.xlu0 %518
        %v521 = vmul.f32 %v466, %v519
        %523 = vrot.lane.b32.xlu0 %v521, 4
        %v524 = vpop.permute.xlu0 %523
        %v526 = vadd.f32 %v517, %v524
        %528 = vrot.lane.b32.xlu0 %v513, 120
        %v529 = vpop.permute.xlu0 %528
        %532 = vrot.lane.b32.xlu0 %v526, 120
        %v533 = vpop.permute.xlu0 %532
        %v535 = vsel %vm495, %v529, %v533
        %v536 = vpack.c.bf16 %v535, %v535
        %537 = vst.msk [vmem:[%s371] sm:$0xf] %vm499, %v536
        %v538 = vpack.c.bf16 %v466, %v466
        %v540 = vunpack.c.l.b16 %v538
        %v541 = vpack.c.b16 %v540, %v540
        %542 = vrot.lane.b32.xlu0 %v541, 112
        %v543 = vpop.permute.xlu0 %542
        %545 = vst.msk [vmem:[%s378] sm:$0xf] %vm499, %v543
        %s546 = sand.u32 %s188, 1
        %s547 = scalar_lea.sflag [#allocation3], %s546
        %s548 = sand.u32 %s188, 1
        %s549 = smul.addr %s548, 4
        %s550 = scalar_lea.vmem [#allocation2], %s549
        %s551 = sand.u32 %s25, 1
        %s552 = scalar_lea.sflag [#allocation5], %s551
        %s553 = sand.u32 %s218, 1
        %s554 = smul.addr %s553, 4
        %s555 = scalar_lea.vmem [#allocation4], %s554
        %s556 = sand.u32 %s25, 1
        %s557 = scalar_lea.sflag [#allocation5], %s556
        %s558 = sand.u32 %s248, 1
        %s559 = smul.addr %s558, 4
        %s560 = scalar_lea.vmem [#allocation6], %s559
        // Predicated region
        $region41: #{tpu_custom_call.1} parent=39 // pred_check
          %p561 = pneg %p198
        $region42: #{tpu_custom_call.1} parent=39 // pred_check_branch
          %563 = sbr.rel (%p561) target = $region44
        $region43: #{tpu_custom_call.1} parent=39 // pred_region
          %s565 = ssub.s32 64, 64
          %566 = vsyncadd %s547, %s565
          %s567 = sadd.s32 %s31, %s32
          %s568 = smul.addr %s30, 4
          %s569 = sadd.s32 %s567, %s568
          %s570 = smul.addr %s569, 64
          %s571 = scalar_lea.hbm %s5, %s570
          %s573 = sshll.u32 %s550, 4
          %s574 = int_to_ptr.vmem [resolvable:$true] %s573
          %576 = dma.vmem_to_hbm [thread:$0]  %s574, 64, %s571, %s547
        $region44: #{tpu_custom_call.1} parent=39 // pred_fallthru
          _
        // Predicated region
        $region45: #{tpu_custom_call.1} parent=39 // pred_check
          %p577 = pneg %p228
        $region46: #{tpu_custom_call.1} parent=39 // pred_check_branch
          %579 = sbr.rel (%p577) target = $region48
        $region47: #{tpu_custom_call.1} parent=39 // pred_region
          %s581 = ssub.s32 64, 64
          %582 = vsyncadd %s552, %s581
          %s583 = sadd.s32 %s31, %s32
          %s584 = smul.addr %s30, 4
          %s585 = sadd.s32 %s583, %s584
          %s586 = smul.addr %s585, 64
          %s587 = scalar_lea.hbm %s6, %s586
          %s589 = sshll.u32 %s555, 4
          %s590 = int_to_ptr.vmem [resolvable:$true] %s589
          %592 = dma.vmem_to_hbm [thread:$0]  %s590, 64, %s587, %s552
        $region48: #{tpu_custom_call.1} parent=39 // pred_fallthru
          _
        // Predicated region
        $region49: #{tpu_custom_call.1} parent=39 // pred_check
          %p593 = pneg %p258
        $region50: #{tpu_custom_call.1} parent=39 // pred_check_branch
          %595 = sbr.rel (%p593) target = $region52
        $region51: #{tpu_custom_call.1} parent=39 // pred_region
          %s597 = ssub.s32 64, 64
          %598 = vsyncadd %s557, %s597
          %s599 = sadd.s32 %s31, %s32
          %s600 = smul.addr %s30, 4
          %s601 = sadd.s32 %s599, %s600
          %s602 = smul.addr %s601, 64
          %s603 = scalar_lea.hbm %s7, %s602
          %s605 = sshll.u32 %s560, 4
          %s606 = int_to_ptr.vmem [resolvable:$true] %s605
          %608 = dma.vmem_to_hbm [thread:$0]  %s606, 64, %s603, %s557
        $region52: #{tpu_custom_call.1} parent=39 // pred_fallthru
          _
      $region40: #{tpu_custom_call.1} parent=5 // pred_fallthru
        _
      %p609 = scmp.le.s32.totalorder 2, %s20
      // Predicated region
      $region53: #{tpu_custom_call.1} parent=5 // pred_check
        %p610 = pneg %p609
      $region54: #{tpu_custom_call.1} parent=5 // pred_check_branch
        %612 = sbr.rel (%p610) target = $region56
      $region55: #{tpu_custom_call.1} parent=5 // pred_region
        %s613 = ssub.s32 %s20, 2
        // Predicated region
        $region57: #{tpu_custom_call.1} parent=55 // pred_check
          %p614 = pneg %p204
        $region58: #{tpu_custom_call.1} parent=55 // pred_check_branch
          %616 = sbr.rel (%p614) target = $region60
        $region59: #{tpu_custom_call.1} parent=55 // pred_region
          %s617 = sand.u32 %s189, 1
          %s618 = scalar_lea.sflag [#allocation3], %s617
          %s619 = sand.u32 %s189, 1
          %s620 = smul.addr %s619, 4
          %s621 = scalar_lea.vmem [#allocation2], %s620
          %622 = dma.done %s618, 64
        $region60: #{tpu_custom_call.1} parent=55 // pred_fallthru
          _
        // Predicated region
        $region61: #{tpu_custom_call.1} parent=55 // pred_check
          %p623 = pneg %p234
        $region62: #{tpu_custom_call.1} parent=55 // pred_check_branch
          %625 = sbr.rel (%p623) target = $region64
        $region63: #{tpu_custom_call.1} parent=55 // pred_region
          %s626 = sand.u32 %s26, 1
          %s627 = scalar_lea.sflag [#allocation5], %s626
          %s628 = sand.u32 %s219, 1
          %s629 = smul.addr %s628, 4
          %s630 = scalar_lea.vmem [#allocation4], %s629
          %631 = dma.done %s627, 64
        $region64: #{tpu_custom_call.1} parent=55 // pred_fallthru
          _
        // Predicated region
        $region65: #{tpu_custom_call.1} parent=55 // pred_check
          %p632 = pneg %p264
        $region66: #{tpu_custom_call.1} parent=55 // pred_check_branch
          %634 = sbr.rel (%p632) target = $region68
        $region67: #{tpu_custom_call.1} parent=55 // pred_region
          %s635 = sand.u32 %s26, 1
          %s636 = scalar_lea.sflag [#allocation5], %s635
          %s637 = sand.u32 %s249, 1
          %s638 = smul.addr %s637, 4
          %s639 = scalar_lea.vmem [#allocation6], %s638
          %640 = dma.done %s636, 64
        $region68: #{tpu_custom_call.1} parent=55 // pred_fallthru
          _
      $region56: #{tpu_custom_call.1} parent=5 // pred_fallthru
        _
    $region6: #{tpu_custom_call.1} parent=1 // loop_footer
      %s24 = sadd.s32 1, %s20
    $region7: #{tpu_custom_call.1} parent=1 // loop_footer_branch
      %19 = sbr.rel target = $region3
    $region8: #{tpu_custom_call.1} parent=1 // loop_exit
      _
    %641 = vsyncpa [#allocation3], 1
    %s642 = scalar_lea.sflag [#allocation3], 1
    %643 = vsyncpa %s642, 1
    %644 = vsyncpa [#allocation5], 1
    %s645 = scalar_lea.sflag [#allocation5], 1
    %646 = vsyncpa %s645, 1

</llo_original>
